<compile_context>
chip_gen: v5e
topology: v5e:2x2
jax: 0.10.0
libtpu: 0.0.40
codegen_flags: <defaults>
</compile_context>

<pallas_src>
import jax
import jax.numpy as jnp
from jax.experimental import pallas as pl
from jax.experimental.pallas import tpu as pltpu


def _round_up(x, m):
    return ((x + m - 1) // m) * m


# ----------------------------- Pallas kernel ------------------------------- #
def gcn2_fused_kernel(a_ref, x_ref, w1_ref, w2_ref, p_ref, z_ref):
    """One grid step = one view.  Fused 2-layer GCN:
         Z = PReLU( A @ (PReLU( A @ (X @ W1) + b1 ) @ W2) + b2 )
       MXU operands are bf16; accumulation and elementwise math are f32.
    """
    a = a_ref[...]                         # (Np, Np) bf16
    p = p_ref[...]                         # (4, Hp)  f32: rows = b1, al1, b2, al2
    b1, al1 = p[0:1, :], p[1:2, :]
    b2, al2 = p[2:3, :], p[3:4, :]

    # Layer 1 (GCNConv order: transform first, then aggregate).
    xw = jnp.dot(x_ref[...], w1_ref[...], preferred_element_type=jnp.float32)
    h = jnp.dot(a, xw.astype(jnp.bfloat16),
                preferred_element_type=jnp.float32) + b1
    h = jnp.where(h > 0, h, al1 * h)       # PReLU (shared alpha, broadcast), f32

    # Layer 2.
    hw = jnp.dot(h.astype(jnp.bfloat16), w2_ref[...],
                 preferred_element_type=jnp.float32)
    z = jnp.dot(a, hw.astype(jnp.bfloat16),
                preferred_element_type=jnp.float32) + b2
    z_ref[...] = jnp.where(z > 0, z, al2 * z)


def gcn_encoder_fused(a_stack, x_stack, w1, w2, packed):
    """All three views in one pallas_call: grid=(V,), view axis parallel."""
    v, np_, _ = a_stack.shape
    fp = x_stack.shape[2]
    hp = w1.shape[1]
    return pl.pallas_call(
        gcn2_fused_kernel,
        out_shape=jax.ShapeDtypeStruct((v, np_, hp), jnp.float32),
        grid=(v,),
        in_specs=[
            pl.BlockSpec((pl.Squeezed(), np_, np_), lambda i: (i, 0, 0)),  # A_hat
            pl.BlockSpec((pl.Squeezed(), np_, fp), lambda i: (i, 0, 0)),   # X
            pl.BlockSpec((fp, hp), lambda i: (0, 0)),                      # W1 (resident)
            pl.BlockSpec((hp, hp), lambda i: (0, 0)),                      # W2 (resident)
            pl.BlockSpec((4, hp), lambda i: (0, 0)),                       # b1/al1/b2/al2
        ],
        out_specs=pl.BlockSpec((pl.Squeezed(), np_, hp), lambda i: (i, 0, 0)),
        compiler_params=pltpu.CompilerParams(
            dimension_semantics=("parallel",)),
    )(a_stack, x_stack, w1, w2, packed)


# ------------------------------- glue (JAX) -------------------------------- #
def feature_masking(key, x, pf):
    """PyGCL FeatureMasking: zero out feature dims with prob pf."""
    keep = jax.random.bernoulli(key, 1.0 - pf, shape=(x.shape[1],))
    return x * keep.astype(x.dtype)[None, :]


def edge_removing(key, edge_weight, pe):
    """PyGCL EdgeRemoving: drop edges with prob pe (zero weight == removed)."""
    keep = jax.random.bernoulli(key, 1.0 - pe, shape=edge_weight.shape)
    return edge_weight * keep.astype(edge_weight.dtype)


def normalized_adjacency_stacked(edge_index, edge_weights, num_nodes):
    """Batched dense GCN-normalized adjacencies D^{-1/2}(A+I)D^{-1/2}.

    edge_weights: [V, E] (one row of weights per view) -> [V, N, N].
    One scatter for all views instead of three separate builds.
    """
    src, dst = edge_index[0], edge_index[1]
    v = edge_weights.shape[0]
    a = jnp.zeros((v, num_nodes, num_nodes), jnp.float32)
    a = a.at[:, dst, src].add(edge_weights)
    a = a + jnp.eye(num_nodes, dtype=jnp.float32)[None]          # self loops
    deg = a.sum(axis=2)
    d_inv_sqrt = jnp.where(deg > 0, 1.0 / jnp.sqrt(deg), 0.0)
    return d_inv_sqrt[:, :, None] * a * d_inv_sqrt[:, None, :]


def encoder_forward(x, edge_index, edge_weight, params, num_nodes, aug_keys):
    """Mirror of Encoder.forward: returns (z, z1, z2)."""
    w1, b1, al1, w2, b2, al2 = params
    f = x.shape[1]
    h = w2.shape[1]
    if edge_weight is None:
        edge_weight = jnp.ones((edge_index.shape[1],), jnp.float32)

    k1a, k1b, k2a, k2b = aug_keys
    # Augmentor 1: FeatureMasking(pf=0.3) + EdgeRemoving(pe=0.3)
    x1 = feature_masking(k1a, x, 0.3)
    ew1 = edge_removing(k1b, edge_weight, 0.3)
    # Augmentor 2: FeatureMasking(pf=0.2) + EdgeRemoving(pe=0.2)
    x2 = feature_masking(k2a, x, 0.2)
    ew2 = edge_removing(k2b, edge_weight, 0.2)

    # Batched adjacency build (one scatter for the three views).
    ew_stack = jnp.stack([edge_weight, ew1, ew2], axis=0)         # [3, E]
    a_stack = normalized_adjacency_stacked(edge_index, ew_stack, num_nodes)
    x_stack = jnp.stack([x, x1, x2], axis=0)                      # [3, N, F]

    # Pad to TPU-friendly (lane-dense) shapes: sublane mult of 8, lane mult of 128.
    np_ = _round_up(num_nodes, 8)
    fp = _round_up(f, 128)
    hp = _round_up(h, 128)

    a_pad = jnp.zeros((3, np_, np_), jnp.float32).at[:, :num_nodes, :num_nodes].set(a_stack)
    x_pad = jnp.zeros((3, np_, fp), jnp.float32).at[:, :num_nodes, :f].set(x_stack)
    w1_pad = jnp.zeros((fp, hp), jnp.float32).at[:f, :h].set(w1)
    w2_pad = jnp.zeros((hp, hp), jnp.float32).at[:h, :h].set(w2)
    packed = jnp.zeros((4, hp), jnp.float32)
    packed = packed.at[0, :h].set(b1)
    packed = packed.at[1, :h].set(al1)
    packed = packed.at[2, :h].set(b2)
    packed = packed.at[3, :h].set(al2)

    z_all = gcn_encoder_fused(a_pad.astype(jnp.bfloat16),
                              x_pad.astype(jnp.bfloat16),
                              w1_pad.astype(jnp.bfloat16),
                              w2_pad.astype(jnp.bfloat16),
                              packed)
    z_all = z_all[:, :num_nodes, :h]
    return z_all[0], z_all[1], z_all[2]


def init_params(key, in_dim, hidden_dim):
    """Deterministic GCN params (glorot weights, zero bias, shared PReLU alpha=0.25)."""
    k1, k2 = jax.random.split(key)
    s1 = jnp.sqrt(6.0 / (in_dim + hidden_dim))
    s2 = jnp.sqrt(6.0 / (hidden_dim + hidden_dim))
    w1 = jax.random.uniform(k1, (in_dim, hidden_dim), jnp.float32, -s1, s1)
    w2 = jax.random.uniform(k2, (hidden_dim, hidden_dim), jnp.float32, -s2, s2)
    b1 = jnp.zeros((hidden_dim,), jnp.float32)
    b2 = jnp.zeros((hidden_dim,), jnp.float32)
    # torch.nn.PReLU() default is a single shared alpha; broadcast it per-channel.
    al1 = jnp.full((hidden_dim,), 0.25, jnp.float32)
    al2 = jnp.full((hidden_dim,), 0.25, jnp.float32)
    return (w1, b1, al1, w2, b2, al2)


# ---------------------------------- main ------------------------------------ #
if __name__ == "__main__":
    N, F, H, E = 16, 32, 32, 40

    root = jax.random.PRNGKey(0)
    k_x, k_ei, k_par, k_a1, k_a2, k_a3, k_a4 = jax.random.split(root, 7)

    x = jax.random.normal(k_x, (N, F), jnp.float32)
    edge_index = jax.random.randint(k_ei, (2, E), 0, N, dtype=jnp.int32)
    edge_weight = None                                   # defaults to ones

    params = init_params(k_par, F, H)

    z, z1, z2 = encoder_forward(x, edge_index, edge_weight, params,
                                num_nodes=N, aug_keys=(k_a1, k_a2, k_a3, k_a4))
    jax.block_until_ready((z, z1, z2))

    assert z.shape == (N, H) and z1.shape == (N, H) and z2.shape == (N, H)
    assert jnp.all(jnp.isfinite(z)) and jnp.all(jnp.isfinite(z1)) and jnp.all(jnp.isfinite(z2))
    print("KERNEL_OK")
</pallas_src>

<mosaic_0001>
module attributes {stable_mosaic.version = 11 : i64} {
  func.func @gcn2_fused_kernel(%arg0: i32, %arg1: memref<1x16x16xbf16, #tpu.memory_space<vmem>>, %arg2: memref<1x16x128xbf16, #tpu.memory_space<vmem>>, %arg3: memref<128x128xbf16, #tpu.memory_space<vmem>>, %arg4: memref<128x128xbf16, #tpu.memory_space<vmem>>, %arg5: memref<4x128xf32, #tpu.memory_space<vmem>>, %arg6: memref<1x16x128xf32, #tpu.memory_space<vmem>>) attributes {dimension_semantics = [#tpu.dimension_semantics<parallel>], iteration_bounds = array<i64: 3>, scalar_prefetch = 0 : i64, scratch_operands = 0 : i64, tpu.core_type = #tpu.core_type<tc>, window_params = [{transform_indices = @transform_0, window_bounds = array<i64: 1, 16, 16>}, {transform_indices = @transform_1, window_bounds = array<i64: 1, 16, 128>}, {pipeline_mode = #tpu.pipeline_mode<synchronous>, transform_indices = @transform_2, window_bounds = array<i64: 128, 128>}, {pipeline_mode = #tpu.pipeline_mode<synchronous>, transform_indices = @transform_3, window_bounds = array<i64: 128, 128>}, {pipeline_mode = #tpu.pipeline_mode<synchronous>, transform_indices = @transform_4, window_bounds = array<i64: 4, 128>}, {transform_indices = @transform_5, window_bounds = array<i64: 1, 16, 128>}]} {
    %c0 = arith.constant 0 : index
    %c0_0 = arith.constant 0 : index
    %c0_1 = arith.constant 0 : index
    %0 = vector.load %arg1[%c0, %c0_0, %c0_1] : memref<1x16x16xbf16, #tpu.memory_space<vmem>>, vector<1x16x16xbf16>
    %1 = vector.shape_cast %0 : vector<1x16x16xbf16> to vector<16x16xbf16>
    %c0_2 = arith.constant 0 : index
    %c0_3 = arith.constant 0 : index
    %2 = vector.load %arg5[%c0_2, %c0_3] : memref<4x128xf32, #tpu.memory_space<vmem>>, vector<4x128xf32>
    %3 = vector.extract_strided_slice %2 {offsets = [0, 0], sizes = [1, 128], strides = [1, 1]} : vector<4x128xf32> to vector<1x128xf32>
    %4 = vector.extract_strided_slice %2 {offsets = [1, 0], sizes = [1, 128], strides = [1, 1]} : vector<4x128xf32> to vector<1x128xf32>
    %5 = vector.extract_strided_slice %2 {offsets = [2, 0], sizes = [1, 128], strides = [1, 1]} : vector<4x128xf32> to vector<1x128xf32>
    %6 = vector.extract_strided_slice %2 {offsets = [3, 0], sizes = [1, 128], strides = [1, 1]} : vector<4x128xf32> to vector<1x128xf32>
    %c0_4 = arith.constant 0 : index
    %c0_5 = arith.constant 0 : index
    %c0_6 = arith.constant 0 : index
    %7 = vector.load %arg2[%c0_4, %c0_5, %c0_6] : memref<1x16x128xbf16, #tpu.memory_space<vmem>>, vector<1x16x128xbf16>
    %8 = vector.shape_cast %7 : vector<1x16x128xbf16> to vector<16x128xbf16>
    %c0_7 = arith.constant 0 : index
    %c0_8 = arith.constant 0 : index
    %9 = vector.load %arg3[%c0_7, %c0_8] : memref<128x128xbf16, #tpu.memory_space<vmem>>, vector<128x128xbf16>
    %cst = arith.constant dense<0.000000e+00> : vector<16x128xf32>
    %10 = tpu.matmul %8, %9, %cst {dimension_numbers = #tpu.dot_dimension_numbers<[1], [0], [0], [1], [0, 0, 1, 1], [], []>} : vector<16x128xbf16>, vector<128x128xbf16>, vector<16x128xf32> -> vector<16x128xf32>
    %11 = arith.truncf %10 : vector<16x128xf32> to vector<16x128xbf16>
    %cst_9 = arith.constant dense<0.000000e+00> : vector<16x128xf32>
    %12 = tpu.matmul %1, %11, %cst_9 {dimension_numbers = #tpu.dot_dimension_numbers<[1], [0], [0], [1], [0, 0, 1, 1], [], []>} : vector<16x16xbf16>, vector<16x128xbf16>, vector<16x128xf32> -> vector<16x128xf32>
    %13 = vector.broadcast %3 : vector<1x128xf32> to vector<16x128xf32>
    %14 = arith.addf %12, %13 : vector<16x128xf32>
    %cst_10 = arith.constant 0.000000e+00 : f32
    %15 = vector.broadcast %cst_10 : f32 to vector<16x128xf32>
    %16 = arith.cmpf ogt, %14, %15 : vector<16x128xf32>
    %17 = vector.broadcast %4 : vector<1x128xf32> to vector<16x128xf32>
    %18 = arith.mulf %17, %14 : vector<16x128xf32>
    %19 = arith.select %16, %14, %18 : vector<16x128xi1>, vector<16x128xf32>
    %20 = arith.truncf %19 : vector<16x128xf32> to vector<16x128xbf16>
    %c0_11 = arith.constant 0 : index
    %c0_12 = arith.constant 0 : index
    %21 = vector.load %arg4[%c0_11, %c0_12] : memref<128x128xbf16, #tpu.memory_space<vmem>>, vector<128x128xbf16>
    %cst_13 = arith.constant dense<0.000000e+00> : vector<16x128xf32>
    %22 = tpu.matmul %20, %21, %cst_13 {dimension_numbers = #tpu.dot_dimension_numbers<[1], [0], [0], [1], [0, 0, 1, 1], [], []>} : vector<16x128xbf16>, vector<128x128xbf16>, vector<16x128xf32> -> vector<16x128xf32>
    %23 = arith.truncf %22 : vector<16x128xf32> to vector<16x128xbf16>
    %cst_14 = arith.constant dense<0.000000e+00> : vector<16x128xf32>
    %24 = tpu.matmul %1, %23, %cst_14 {dimension_numbers = #tpu.dot_dimension_numbers<[1], [0], [0], [1], [0, 0, 1, 1], [], []>} : vector<16x16xbf16>, vector<16x128xbf16>, vector<16x128xf32> -> vector<16x128xf32>
    %25 = vector.broadcast %5 : vector<1x128xf32> to vector<16x128xf32>
    %26 = arith.addf %24, %25 : vector<16x128xf32>
    %cst_15 = arith.constant 0.000000e+00 : f32
    %27 = vector.broadcast %cst_15 : f32 to vector<16x128xf32>
    %28 = arith.cmpf ogt, %26, %27 : vector<16x128xf32>
    %29 = vector.broadcast %6 : vector<1x128xf32> to vector<16x128xf32>
    %30 = arith.mulf %29, %26 : vector<16x128xf32>
    %31 = arith.select %28, %26, %30 : vector<16x128xi1>, vector<16x128xf32>
    %c0_16 = arith.constant 0 : index
    %c0_17 = arith.constant 0 : index
    %c0_18 = arith.constant 0 : index
    %32 = vector.load %arg6[%c0_16, %c0_17, %c0_18] : memref<1x16x128xf32, #tpu.memory_space<vmem>>, vector<1x16x128xf32>
    %33 = vector.shape_cast %32 : vector<1x16x128xf32> to vector<16x128xf32>
    %34 = vector.shape_cast %31 : vector<16x128xf32> to vector<1x16x128xf32>
    tpu.vector_store %arg6[%c0_16, %c0_17, %c0_18], %34 {strides = array<i32>} : memref<1x16x128xf32, #tpu.memory_space<vmem>>, vector<1x16x128xf32>,
    return
  }
  func.func @transform_0(%arg0: i32) -> (i32, i32, i32) {
    %c0_i32 = arith.constant 0 : i32
    %c0_i32_0 = arith.constant 0 : i32
    %c0_i32_1 = arith.constant 0 : i32
    return %arg0, %c0_i32, %c0_i32_0 : i32, i32, i32
  }
  func.func @transform_1(%arg0: i32) -> (i32, i32, i32) {
    %c0_i32 = arith.constant 0 : i32
    %c0_i32_0 = arith.constant 0 : i32
    %c0_i32_1 = arith.constant 0 : i32
    return %arg0, %c0_i32, %c0_i32_0 : i32, i32, i32
  }
  func.func @transform_2(%arg0: i32) -> (i32, i32) {
    %c0_i32 = arith.constant 0 : i32
    %c0_i32_0 = arith.constant 0 : i32
    %c0_i32_1 = arith.constant 0 : i32
    return %c0_i32, %c0_i32_0 : i32, i32
  }
  func.func @transform_3(%arg0: i32) -> (i32, i32) {
    %c0_i32 = arith.constant 0 : i32
    %c0_i32_0 = arith.constant 0 : i32
    %c0_i32_1 = arith.constant 0 : i32
    return %c0_i32, %c0_i32_0 : i32, i32
  }
  func.func @transform_4(%arg0: i32) -> (i32, i32) {
    %c0_i32 = arith.constant 0 : i32
    %c0_i32_0 = arith.constant 0 : i32
    %c0_i32_1 = arith.constant 0 : i32
    return %c0_i32, %c0_i32_0 : i32, i32
  }
  func.func @transform_5(%arg0: i32) -> (i32, i32, i32) {
    %c0_i32 = arith.constant 0 : i32
    %c0_i32_0 = arith.constant 0 : i32
    %c0_i32_1 = arith.constant 0 : i32
    return %arg0, %c0_i32, %c0_i32_0 : i32, i32, i32
  }
}

</mosaic_0001>

<llo_original>
// kernel: tpu_custom_call.1
$region0: #{tpu_custom_call.1}
  #allocation0 [shape = 'u32[]', space=smem, size = 0x4, offset = 0x4, fixed_abs, tag = 'smem constant byte address 0x4 - core index']
  #allocation1 [shape = 'u32[72,128]{1,0:T(1,128)}', space=vmem, size = 0x9000, scoped, tag = 'internal scratch']
  %s0 = inlined_call_operand.hbm [shape: bf16[3,16,16], index: 0, kind: input, shape index: {}]
  %s1 = inlined_call_operand.hbm [shape: bf16[3,16,128], index: 1, kind: input, shape index: {}]
  %s2 = inlined_call_operand.hbm [shape: bf16[128,128], index: 2, kind: input, shape index: {}]
  %s3 = inlined_call_operand.hbm [shape: bf16[128,128], index: 3, kind: input, shape index: {}]
  %s4 = inlined_call_operand.hbm [shape: f32[4,128], index: 4, kind: input, shape index: {}]
  %s5 = inlined_call_operand.hbm [shape: f32[3,16,128], index: 5, kind: output, shape index: {}]
  %s6 = sld [smem:[#allocation0]]
  $region73: #{tpu_custom_call.1} parent=0
    _
  %s8 = ssub.s32 1, %s6
  %s9 = scalar_select 0, %s8, %s6
  $region1: #{tpu_custom_call.1} parent=0
    #allocation2 [shape = 'u8[8192]{0}', space=vmem, size = 0x2000, scoped, tag = 'input window, operand 0']
    #allocation3 [shape = 's32[2]{0}', space=sflag, size = 0x8, scoped, tag = 'scoped memory for tpu_custom_call.1']
    #allocation4 [shape = 's32[2]{0}', space=sflag, size = 0x8, scoped, tag = 'scoped memory for tpu_custom_call.1']
    #allocation5 [shape = 'u8[8192]{0}', space=vmem, size = 0x2000, scoped, tag = 'input window, operand 1']
    #allocation6 [shape = 's32[2]{0}', space=sflag, size = 0x8, scoped, tag = 'scoped memory for tpu_custom_call.1']
    #allocation7 [shape = 'u8[32768]{0}', space=vmem, size = 0x8000, scoped, tag = 'input window, operand 2, single buffered']
    #allocation8 [shape = 'u8[32768]{0}', space=vmem, size = 0x8000, scoped, tag = 'input window, operand 3, single buffered']
    #allocation9 [shape = 's32[1]{0}', space=sflag, size = 0x4, scoped, tag = 'scoped memory for tpu_custom_call.1']
    #allocation10 [shape = 'u8[2048]{0}', space=vmem, size = 0x800, scoped, tag = 'input window, operand 4, single buffered']
    #allocation11 [shape = 'u8[16384]{0}', space=vmem, size = 0x4000, scoped, tag = 'output window, operand 0']
    %10 = vsyncpa [#allocation3], 0
    %s11 = scalar_lea.sflag [#allocation3], 1
    %12 = vsyncpa %s11, 0
    %13 = vsyncpa [#allocation6], 0
    %s14 = scalar_lea.sflag [#allocation6], 1
    %15 = vsyncpa %s14, 0
    %16 = vsyncpa [#allocation9], 0
    %17 = vsyncpa [#allocation4], 0
    %s18 = scalar_lea.sflag [#allocation4], 1
    %19 = vsyncpa %s18, 0
    loop: start=0, step=1, limit=5
    $region2: #{tpu_custom_call.1} parent=1 // loop_pre_header
      _
    $region3: #{tpu_custom_call.1} parent=1 // loop_header
      %s21 = sphi 0, %s25
      %p22 = scmp.ge.s32.totalorder %s21, 5
      %s31 = sphi 0, %s33
      %s34 = sphi 0, %s31
      %s35 = sphi 0, %s34
      %s51 = sphi 0, %s35
      %s57 = sphi 0, %s59
      %s60 = sphi 0, %s57
      %s61 = sphi 0, %s60
      %s77 = sphi 0, %s61
      %s81 = sphi 0, %s81
      %s83 = sphi 0, %s81
      %s84 = sphi 0, %s83
      %s98 = sphi 0, %s84
      %s102 = sphi 0, %s102
      %s104 = sphi 0, %s102
      %s105 = sphi 0, %s104
      %s119 = sphi 0, %s105
      %s123 = sphi 0, %s123
      %s125 = sphi 0, %s123
      %s126 = sphi 0, %s125
      %s140 = sphi 0, %s126
      %s146 = sphi 0, %s148
      %s149 = sphi 0, %s146
      %s150 = sphi 0, %s149
      %s166 = sphi 0, %s150
    $region4: #{tpu_custom_call.1} parent=1 // loop_header_branch
      %24 = sbr.rel (%p22) target = $region8
    $region5: #{tpu_custom_call.1} parent=1 // loop_body
      %s26 = ssub.s32 %s21, 1
      %s27 = ssub.s32 %s21, 2
      %s28 = sadd.s32 %s21, 1
      %s29 = ssub.s32 %s21, %s28
      %p30 = scmp.eq.s32.totalorder %s29, 0
      %s32 = sadd.s32 %s31, 1
      %s33 = scalar_select %p30, %s31, %s32
      %p36 = pneg %p30
      %p37 = scmp.eq.s32.totalorder %s21, 2
      %p38 = por %p36, %p37
      %p39 = scmp.ne.s32.totalorder %s31, %s34
      %p40 = scmp.eq.s32.totalorder %s21, 0
      %p41 = por %p39, %p40
      %p42 = scmp.ne.s32.totalorder %s31, %s34
      %p43 = scmp.eq.s32.totalorder %s26, 2
      %p44 = por %p42, %p43
      %p45 = scmp.ne.s32.totalorder %s34, %s35
      %p46 = scmp.eq.s32.totalorder %s26, 0
      %p47 = por %p45, %p46
      %p48 = scmp.ne.s32.totalorder %s34, %s35
      %p49 = scmp.eq.s32.totalorder %s27, 2
      %p50 = por %p48, %p49
      %p52 = scmp.ne.s32.totalorder %s35, %s51
      %p53 = scmp.eq.s32.totalorder %s27, 0
      %p54 = por %p52, %p53
      %s55 = ssub.s32 %s21, %s28
      %p56 = scmp.eq.s32.totalorder %s55, 0
      %s58 = sadd.s32 %s57, 1
      %s59 = scalar_select %p56, %s57, %s58
      %p62 = pneg %p56
      %p63 = scmp.eq.s32.totalorder %s21, 2
      %p64 = por %p62, %p63
      %p65 = scmp.ne.s32.totalorder %s57, %s60
      %p66 = scmp.eq.s32.totalorder %s21, 0
      %p67 = por %p65, %p66
      %p68 = scmp.ne.s32.totalorder %s57, %s60
      %p69 = scmp.eq.s32.totalorder %s26, 2
      %p70 = por %p68, %p69
      %p71 = scmp.ne.s32.totalorder %s60, %s61
      %p72 = scmp.eq.s32.totalorder %s26, 0
      %p73 = por %p71, %p72
      %p74 = scmp.ne.s32.totalorder %s60, %s61
      %p75 = scmp.eq.s32.totalorder %s27, 2
      %p76 = por %p74, %p75
      %p78 = scmp.ne.s32.totalorder %s61, %s77
      %p79 = scmp.eq.s32.totalorder %s27, 0
      %p80 = por %p78, %p79
      %s82 = sadd.s32 %s81, 1
      %p85 = scmp.eq.s32.totalorder %s21, 2
      %p86 = scmp.ne.s32.totalorder %s81, %s83
      %p87 = scmp.eq.s32.totalorder %s21, 0
      %p88 = por %p86, %p87
      %p89 = scmp.ne.s32.totalorder %s81, %s83
      %p90 = scmp.eq.s32.totalorder %s26, 2
      %p91 = por %p89, %p90
      %p92 = scmp.ne.s32.totalorder %s83, %s84
      %p93 = scmp.eq.s32.totalorder %s26, 0
      %p94 = por %p92, %p93
      %p95 = scmp.ne.s32.totalorder %s83, %s84
      %p96 = scmp.eq.s32.totalorder %s27, 2
      %p97 = por %p95, %p96
      %p99 = scmp.ne.s32.totalorder %s84, %s98
      %p100 = scmp.eq.s32.totalorder %s27, 0
      %p101 = por %p99, %p100
      %s103 = sadd.s32 %s102, 1
      %p106 = scmp.eq.s32.totalorder %s21, 2
      %p107 = scmp.ne.s32.totalorder %s102, %s104
      %p108 = scmp.eq.s32.totalorder %s21, 0
      %p109 = por %p107, %p108
      %p110 = scmp.ne.s32.totalorder %s102, %s104
      %p111 = scmp.eq.s32.totalorder %s26, 2
      %p112 = por %p110, %p111
      %p113 = scmp.ne.s32.totalorder %s104, %s105
      %p114 = scmp.eq.s32.totalorder %s26, 0
      %p115 = por %p113, %p114
      %p116 = scmp.ne.s32.totalorder %s104, %s105
      %p117 = scmp.eq.s32.totalorder %s27, 2
      %p118 = por %p116, %p117
      %p120 = scmp.ne.s32.totalorder %s105, %s119
      %p121 = scmp.eq.s32.totalorder %s27, 0
      %p122 = por %p120, %p121
      %s124 = sadd.s32 %s123, 1
      %p127 = scmp.eq.s32.totalorder %s21, 2
      %p128 = scmp.ne.s32.totalorder %s123, %s125
      %p129 = scmp.eq.s32.totalorder %s21, 0
      %p130 = por %p128, %p129
      %p131 = scmp.ne.s32.totalorder %s123, %s125
      %p132 = scmp.eq.s32.totalorder %s26, 2
      %p133 = por %p131, %p132
      %p134 = scmp.ne.s32.totalorder %s125, %s126
      %p135 = scmp.eq.s32.totalorder %s26, 0
      %p136 = por %p134, %p135
      %p137 = scmp.ne.s32.totalorder %s125, %s126
      %p138 = scmp.eq.s32.totalorder %s27, 2
      %p139 = por %p137, %p138
      %p141 = scmp.ne.s32.totalorder %s126, %s140
      %p142 = scmp.eq.s32.totalorder %s27, 0
      %p143 = por %p141, %p142
      %s144 = ssub.s32 %s21, %s28
      %p145 = scmp.eq.s32.totalorder %s144, 0
      %s147 = sadd.s32 %s146, 1
      %s148 = scalar_select %p145, %s146, %s147
      %p151 = pneg %p145
      %p152 = scmp.eq.s32.totalorder %s21, 2
      %p153 = por %p151, %p152
      %p154 = scmp.ne.s32.totalorder %s146, %s149
      %p155 = scmp.eq.s32.totalorder %s21, 0
      %p156 = por %p154, %p155
      %p157 = scmp.ne.s32.totalorder %s146, %s149
      %p158 = scmp.eq.s32.totalorder %s26, 2
      %p159 = por %p157, %p158
      %p160 = scmp.ne.s32.totalorder %s149, %s150
      %p161 = scmp.eq.s32.totalorder %s26, 0
      %p162 = por %p160, %p161
      %p163 = scmp.ne.s32.totalorder %s149, %s150
      %p164 = scmp.eq.s32.totalorder %s27, 2
      %p165 = por %p163, %p164
      %p167 = scmp.ne.s32.totalorder %s150, %s166
      %p168 = scmp.eq.s32.totalorder %s27, 0
      %p169 = por %p167, %p168
      %p170 = scmp.le.s32.totalorder 1, %s21
      %p171 = scmp.lt.s32.totalorder %s21, 4
      %p172 = pnand %p170, %p171
      %p173 = pneg %p172
      // Predicated region
      $region9: #{tpu_custom_call.1} parent=5 // pred_check
        _
      $region10: #{tpu_custom_call.1} parent=5 // pred_check_branch
        %175 = sbr.rel (%p172) target = $region12
      $region11: #{tpu_custom_call.1} parent=5 // pred_region
        %s176 = ssub.s32 %s21, 1
        // Predicated region
        $region13: #{tpu_custom_call.1} parent=11 // pred_check
          %p177 = pneg %p94
        $region14: #{tpu_custom_call.1} parent=11 // pred_check_branch
          %179 = sbr.rel (%p177) target = $region16
        $region15: #{tpu_custom_call.1} parent=11 // pred_region
          %181 = vsyncadd [#allocation6], 0
          %s182 = sshll.u32 %s2, 4
          %s183 = int_to_ptr.hbm [resolvable:$true] %s182
          %s184 = sshll.u32 [#allocation7], 4
          %s185 = int_to_ptr.vmem [resolvable:$true] %s184
          %190 = dma.hbm_to_vmem [thread:$0]  %s183, 1024, %s185, [#allocation6], 64, 64, 4
        $region16: #{tpu_custom_call.1} parent=11 // pred_fallthru
          _
        // Predicated region
        $region17: #{tpu_custom_call.1} parent=11 // pred_check
          %p191 = pneg %p115
        $region18: #{tpu_custom_call.1} parent=11 // pred_check_branch
          %193 = sbr.rel (%p191) target = $region20
        $region19: #{tpu_custom_call.1} parent=11 // pred_region
          %195 = vsyncadd [#allocation9], 0
          %s196 = sshll.u32 %s3, 4
          %s197 = int_to_ptr.hbm [resolvable:$true] %s196
          %s198 = sshll.u32 [#allocation8], 4
          %s199 = int_to_ptr.vmem [resolvable:$true] %s198
          %204 = dma.hbm_to_vmem [thread:$0]  %s197, 1024, %s199, [#allocation9], 64, 64, 4
        $region20: #{tpu_custom_call.1} parent=11 // pred_fallthru
          _
        // Predicated region
        $region21: #{tpu_custom_call.1} parent=11 // pred_check
          %p205 = pneg %p136
        $region22: #{tpu_custom_call.1} parent=11 // pred_check_branch
          %207 = sbr.rel (%p205) target = $region24
        $region23: #{tpu_custom_call.1} parent=11 // pred_region
          %209 = vsyncadd [#allocation9], 0
          %s211 = sshll.u32 %s4, 4
          %s212 = int_to_ptr.hbm [resolvable:$true] %s211
          %s213 = sshll.u32 [#allocation10], 4
          %s214 = int_to_ptr.vmem [resolvable:$true] %s213
          %216 = dma.hbm_to_vmem [thread:$0]  %s212, 64, %s214, [#allocation9]
        $region24: #{tpu_custom_call.1} parent=11 // pred_fallthru
          _
      $region12: #{tpu_custom_call.1} parent=5 // pred_fallthru
        _
      %p217 = scmp.lt.s32.totalorder %s21, 3
      // Predicated region
      $region25: #{tpu_custom_call.1} parent=5 // pred_check
        %p218 = pneg %p217
      $region26: #{tpu_custom_call.1} parent=5 // pred_check_branch
        %220 = sbr.rel (%p218) target = $region28
      $region27: #{tpu_custom_call.1} parent=5 // pred_region
        // Predicated region
        $region29: #{tpu_custom_call.1} parent=27 // pred_check
          %p221 = pneg %p41
        $region30: #{tpu_custom_call.1} parent=27 // pred_check_branch
          %223 = sbr.rel (%p221) target = $region32
        $region31: #{tpu_custom_call.1} parent=27 // pred_region
          %s224 = sand.u32 %s31, 1
          %s225 = scalar_lea.sflag [#allocation3], %s224
          %s226 = sand.u32 %s31, 1
          %s227 = smul.addr %s226, 8
          %s228 = scalar_lea.vmem [#allocation2], %s227
          %230 = vsyncadd %s225, 0
          %s231 = smul.addr %s21, 2
          %s232 = smul.addr %s231, 4
          %s233 = scalar_lea.hbm %s0, %s232
          %s234 = sshll.u32 %s233, 4
          %s235 = int_to_ptr.hbm [resolvable:$true] %s234
          %s236 = sshll.u32 %s228, 4
          %s237 = int_to_ptr.vmem [resolvable:$true] %s236
          %242 = dma.hbm_to_vmem [thread:$0]  %s235, 128, %s237, %s225, 64, 64, 4
        $region32: #{tpu_custom_call.1} parent=27 // pred_fallthru
          _
        // Predicated region
        $region33: #{tpu_custom_call.1} parent=27 // pred_check
          %p243 = pneg %p67
        $region34: #{tpu_custom_call.1} parent=27 // pred_check_branch
          %245 = sbr.rel (%p243) target = $region36
        $region35: #{tpu_custom_call.1} parent=27 // pred_region
          %s246 = sand.u32 %s21, 1
          %s247 = scalar_lea.sflag [#allocation6], %s246
          %s248 = sand.u32 %s57, 1
          %s249 = smul.addr %s248, 8
          %s250 = scalar_lea.vmem [#allocation5], %s249
          %252 = vsyncadd %s247, 0
          %s253 = smul.addr %s21, 2
          %s254 = smul.addr %s253, 4
          %s255 = scalar_lea.hbm %s1, %s254
          %s256 = sshll.u32 %s255, 4
          %s257 = int_to_ptr.hbm [resolvable:$true] %s256
          %s258 = sshll.u32 %s250, 4
          %s259 = int_to_ptr.vmem [resolvable:$true] %s258
          %264 = dma.hbm_to_vmem [thread:$0]  %s257, 128, %s259, %s247, 64, 64, 4
        $region36: #{tpu_custom_call.1} parent=27 // pred_fallthru
          _
      $region28: #{tpu_custom_call.1} parent=5 // pred_fallthru
        _
      %p265 = scmp.le.s32.totalorder 1, %s21
      %p266 = scmp.lt.s32.totalorder %s21, 4
      %p267 = pnand %p265, %p266
      %p268 = pneg %p267
      // Predicated region
      $region37: #{tpu_custom_call.1} parent=5 // pred_check
        _
      $region38: #{tpu_custom_call.1} parent=5 // pred_check_branch
        %270 = sbr.rel (%p267) target = $region40
      $region39: #{tpu_custom_call.1} parent=5 // pred_region
        %s271 = ssub.s32 %s21, 1
        %s272 = sand.u32 %s34, 1
        %s273 = scalar_lea.sflag [#allocation3], %s272
        %s274 = sand.u32 %s34, 1
        %s275 = smul.addr %s274, 8
        %s276 = scalar_lea.vmem [#allocation2], %s275
        // Predicated region
        $region41: #{tpu_custom_call.1} parent=39 // pred_check
          %p277 = pneg %p47
        $region42: #{tpu_custom_call.1} parent=39 // pred_check_branch
          %279 = sbr.rel (%p277) target = $region44
        $region43: #{tpu_custom_call.1} parent=39 // pred_region
          %281 = dma.done %s273, 128
        $region44: #{tpu_custom_call.1} parent=39 // pred_fallthru
          _
        %s282 = sand.u32 %s26, 1
        %s283 = scalar_lea.sflag [#allocation6], %s282
        %s284 = sand.u32 %s60, 1
        %s285 = smul.addr %s284, 8
        %s286 = scalar_lea.vmem [#allocation5], %s285
        // Predicated region
        $region45: #{tpu_custom_call.1} parent=39 // pred_check
          %p287 = pneg %p73
        $region46: #{tpu_custom_call.1} parent=39 // pred_check_branch
          %289 = sbr.rel (%p287) target = $region48
        $region47: #{tpu_custom_call.1} parent=39 // pred_region
          %291 = dma.done %s283, 128
        $region48: #{tpu_custom_call.1} parent=39 // pred_fallthru
          _
        // Predicated region
        $region49: #{tpu_custom_call.1} parent=39 // pred_check
          %p292 = pneg %p94
        $region50: #{tpu_custom_call.1} parent=39 // pred_check_branch
          %294 = sbr.rel (%p292) target = $region52
        $region51: #{tpu_custom_call.1} parent=39 // pred_region
          %296 = dma.done [#allocation6], 1024
        $region52: #{tpu_custom_call.1} parent=39 // pred_fallthru
          _
        // Predicated region
        $region53: #{tpu_custom_call.1} parent=39 // pred_check
          %p297 = pneg %p115
        $region54: #{tpu_custom_call.1} parent=39 // pred_check_branch
          %299 = sbr.rel (%p297) target = $region56
        $region55: #{tpu_custom_call.1} parent=39 // pred_region
          %301 = dma.done [#allocation9], 1024
        $region56: #{tpu_custom_call.1} parent=39 // pred_fallthru
          _
        // Predicated region
        $region57: #{tpu_custom_call.1} parent=39 // pred_check
          %p302 = pneg %p136
        $region58: #{tpu_custom_call.1} parent=39 // pred_check_branch
          %304 = sbr.rel (%p302) target = $region60
        $region59: #{tpu_custom_call.1} parent=39 // pred_region
          %306 = dma.done [#allocation9], 64
        $region60: #{tpu_custom_call.1} parent=39 // pred_fallthru
          _
        %s307 = sand.u32 %s34, 1
        %s308 = scalar_lea.sflag [#allocation3], %s307
        %s309 = sand.u32 %s34, 1
        %s310 = smul.addr %s309, 8
        %s311 = scalar_lea.vmem [#allocation2], %s310
        %p312 = pneg %p47
        %p313 = pneg %p44
        %s314 = sand.u32 %s26, 1
        %s315 = scalar_lea.sflag [#allocation6], %s314
        %s316 = sand.u32 %s60, 1
        %s317 = smul.addr %s316, 8
        %s318 = scalar_lea.vmem [#allocation5], %s317
        %p319 = pneg %p73
        %p320 = pneg %p70
        %p321 = pneg %p94
        %p322 = pneg %p91
        %p323 = pneg %p115
        %p324 = pneg %p112
        %p325 = pneg %p136
        %p326 = pneg %p133
        %p327 = pneg %p162
        %p328 = pneg %p159
        %s329 = sand.u32 %s149, 1
        %s330 = scalar_lea.sflag [#allocation4], %s329
        %s331 = sand.u32 %s149, 1
        %s332 = smul.addr %s331, 16
        %s333 = scalar_lea.vmem [#allocation11], %s332
        %v335 = vld [vmem:[%s276] sm:$0xf]
        %v336 = vld [vmem:[%s276 + $0x4] sm:$0xf]
        %v337 = vld [vmem:[#allocation10] sm:$0xf]
        %v338 = vld [vmem:[%s286] sm:$0xf]
        %v339 = vld [vmem:[%s286 + $0x4] sm:$0xf]
        %v340 = vld [vmem:[#allocation7] sm:$0xf]
        %v341 = vld [vmem:[#allocation7 + $0x4] sm:$0xf]
        %v342 = vld [vmem:[#allocation7 + $0x8] sm:$0xf]
        %v343 = vld [vmem:[#allocation7 + $0xc] sm:$0xf]
        %v344 = vld [vmem:[#allocation7 + $0x10] sm:$0xf]
        %v345 = vld [vmem:[#allocation7 + $0x14] sm:$0xf]
        %v346 = vld [vmem:[#allocation7 + $0x18] sm:$0xf]
        %v347 = vld [vmem:[#allocation7 + $0x1c] sm:$0xf]
        %v348 = vld [vmem:[#allocation7 + $0x20] sm:$0xf]
        %v349 = vld [vmem:[#allocation7 + $0x24] sm:$0xf]
        %v350 = vld [vmem:[#allocation7 + $0x28] sm:$0xf]
        %v351 = vld [vmem:[#allocation7 + $0x2c] sm:$0xf]
        %v352 = vld [vmem:[#allocation7 + $0x30] sm:$0xf]
        %v353 = vld [vmem:[#allocation7 + $0x34] sm:$0xf]
        %v354 = vld [vmem:[#allocation7 + $0x38] sm:$0xf]
        %v355 = vld [vmem:[#allocation7 + $0x3c] sm:$0xf]
        %v358 = vunpack.c.l.b16 %v338
        %v359 = vunpack.c.l.b16 %v339
        %v360 = vpack.c.b16 %v359, %v358
        %v378 = vunpack.c.l.b16 %v340
        %v379 = vunpack.c.l.b16 %v341
        %v380 = vunpack.c.l.b16 %v342
        %v381 = vunpack.c.l.b16 %v343
        %v382 = vunpack.c.l.b16 %v344
        %v383 = vunpack.c.l.b16 %v345
        %v384 = vunpack.c.l.b16 %v346
        %v385 = vunpack.c.l.b16 %v347
        %v386 = vunpack.c.l.b16 %v348
        %v387 = vunpack.c.l.b16 %v349
        %v388 = vunpack.c.l.b16 %v350
        %v389 = vunpack.c.l.b16 %v351
        %v390 = vunpack.c.l.b16 %v352
        %v391 = vunpack.c.l.b16 %v353
        %v392 = vunpack.c.l.b16 %v354
        %v393 = vunpack.c.l.b16 %v355
        %v394 = vpack.c.b16 %v379, %v378
        %v395 = vpack.c.b16 %v381, %v380
        %v396 = vpack.c.b16 %v383, %v382
        %v397 = vpack.c.b16 %v385, %v384
        %v398 = vpack.c.b16 %v387, %v386
        %v399 = vpack.c.b16 %v389, %v388
        %v400 = vpack.c.b16 %v391, %v390
        %v401 = vpack.c.b16 %v393, %v392
        %410 = vmatpush.bf16.msra.mxu0 %v401
        %411 = vmatpush.bf16.msra.mxu0 %v400
        %412 = vmatpush.bf16.msra.mxu0 %v399
        %413 = vmatpush.bf16.msra.mxu0 %v398
        %414 = vmatpush.bf16.msra.mxu0 %v397
        %415 = vmatpush.bf16.msra.mxu0 %v396
        %416 = vmatpush.bf16.msra.mxu0 %v395
        %417 = vmatpush.bf16.msra.mxu0 %v394
        %418 = vmatmul.bf16.gmra.mxu0 %v360
        %v419 = vpop.f32.mrf.mxu0
        %v420 = vadd.f32 0.0, %v419
        %v421 = vpop.f32.mrf.mxu0
        %v422 = vadd.f32 0.0, %v421
        %423 = vdwg.mxu0
        %v424 = vpack.c.bf16 %v422, %v420
        %v425 = vperm.slane %v337, 0
        %v428 = vunpack.c.l.b16 %v335
        %v429 = vunpack.c.l.b16 %v336
        %v430 = vpack.c.b16 %v429, %v428
        %vm431 = vcmask 130048
        %v433 = vsel %vm431, %v430, 0
        %435 = vmatpush.bf16.msra.mxu0 0
        %436 = vmatpush.bf16.msra.mxu0 0
        %437 = vmatpush.bf16.msra.mxu0 0
        %438 = vmatpush.bf16.msra.mxu0 0
        %439 = vmatpush.bf16.msra.mxu0 0
        %440 = vmatpush.bf16.msra.mxu0 0
        %441 = vmatpush.bf16.msra.mxu0 0
        %442 = vmatpush.bf16.msra.mxu0 %v424
        %443 = vmatmul.bf16.gmra.mxu0 %v433
        %v444 = vpop.f32.mrf.mxu0
        %v445 = vadd.f32 %v425, %v444
        %v446 = vpop.f32.mrf.mxu0
        %v447 = vadd.f32 %v425, %v446
        %448 = vdwg.mxu0
        %vm449 = vcmp.gt.f32.partialorder %v445, 0.0
        %vm450 = vcmp.gt.f32.partialorder %v447, 0.0
        %v451 = vperm.slane %v337, 1
        %v452 = vmul.f32 %v451, %v445
        %v453 = vmul.f32 %v451, %v447
        %v454 = vsel %vm449, %v445, %v452
        %v455 = vsel %vm450, %v447, %v453
        %v456 = vpack.c.bf16 %v455, %v454
        %v457 = vld [vmem:[#allocation8] sm:$0xf]
        %v458 = vld [vmem:[#allocation8 + $0x4] sm:$0xf]
        %v459 = vld [vmem:[#allocation8 + $0x8] sm:$0xf]
        %v460 = vld [vmem:[#allocation8 + $0xc] sm:$0xf]
        %v461 = vld [vmem:[#allocation8 + $0x10] sm:$0xf]
        %v462 = vld [vmem:[#allocation8 + $0x14] sm:$0xf]
        %v463 = vld [vmem:[#allocation8 + $0x18] sm:$0xf]
        %v464 = vld [vmem:[#allocation8 + $0x1c] sm:$0xf]
        %v465 = vld [vmem:[#allocation8 + $0x20] sm:$0xf]
        %v466 = vld [vmem:[#allocation8 + $0x24] sm:$0xf]
        %v467 = vld [vmem:[#allocation8 + $0x28] sm:$0xf]
        %v468 = vld [vmem:[#allocation8 + $0x2c] sm:$0xf]
        %v469 = vld [vmem:[#allocation8 + $0x30] sm:$0xf]
        %v470 = vld [vmem:[#allocation8 + $0x34] sm:$0xf]
        %v471 = vld [vmem:[#allocation8 + $0x38] sm:$0xf]
        %v472 = vld [vmem:[#allocation8 + $0x3c] sm:$0xf]
        %v489 = vunpack.c.l.b16 %v457
        %v490 = vunpack.c.l.b16 %v458
        %v491 = vunpack.c.l.b16 %v459
        %v492 = vunpack.c.l.b16 %v460
        %v493 = vunpack.c.l.b16 %v461
        %v494 = vunpack.c.l.b16 %v462
        %v495 = vunpack.c.l.b16 %v463
        %v496 = vunpack.c.l.b16 %v464
        %v497 = vunpack.c.l.b16 %v465
        %v498 = vunpack.c.l.b16 %v466
        %v499 = vunpack.c.l.b16 %v467
        %v500 = vunpack.c.l.b16 %v468
        %v501 = vunpack.c.l.b16 %v469
        %v502 = vunpack.c.l.b16 %v470
        %v503 = vunpack.c.l.b16 %v471
        %v504 = vunpack.c.l.b16 %v472
        %v505 = vpack.c.b16 %v490, %v489
        %v506 = vpack.c.b16 %v492, %v491
        %v507 = vpack.c.b16 %v494, %v493
        %v508 = vpack.c.b16 %v496, %v495
        %v509 = vpack.c.b16 %v498, %v497
        %v510 = vpack.c.b16 %v500, %v499
        %v511 = vpack.c.b16 %v502, %v501
        %v512 = vpack.c.b16 %v504, %v503
        %521 = vmatpush.bf16.msra.mxu0 %v512
        %522 = vmatpush.bf16.msra.mxu0 %v511
        %523 = vmatpush.bf16.msra.mxu0 %v510
        %524 = vmatpush.bf16.msra.mxu0 %v509
        %525 = vmatpush.bf16.msra.mxu0 %v508
        %526 = vmatpush.bf16.msra.mxu0 %v507
        %527 = vmatpush.bf16.msra.mxu0 %v506
        %528 = vmatpush.bf16.msra.mxu0 %v505
        %529 = vmatmul.bf16.gmra.mxu0 %v456
        %v530 = vpop.f32.mrf.mxu0
        %v531 = vadd.f32 0.0, %v530
        %v532 = vpop.f32.mrf.mxu0
        %v533 = vadd.f32 0.0, %v532
        %534 = vdwg.mxu0
        %v535 = vpack.c.bf16 %v533, %v531
        %v536 = vperm.slane %v337, 2
        %537 = vmatpush.bf16.msra.mxu0 0
        %538 = vmatpush.bf16.msra.mxu0 0
        %539 = vmatpush.bf16.msra.mxu0 0
        %540 = vmatpush.bf16.msra.mxu0 0
        %541 = vmatpush.bf16.msra.mxu0 0
        %542 = vmatpush.bf16.msra.mxu0 0
        %543 = vmatpush.bf16.msra.mxu0 0
        %544 = vmatpush.bf16.msra.mxu0 %v535
        %545 = vmatmul.bf16.gmra.mxu0 %v433
        %v546 = vpop.f32.mrf.mxu0
        %v547 = vadd.f32 %v536, %v546
        %v548 = vpop.f32.mrf.mxu0
        %v549 = vadd.f32 %v536, %v548
        %550 = vdwg.mxu0
        %vm551 = vcmp.gt.f32.partialorder %v547, 0.0
        %vm552 = vcmp.gt.f32.partialorder %v549, 0.0
        %v553 = vperm.slane %v337, 3
        %v554 = vmul.f32 %v553, %v547
        %v555 = vmul.f32 %v553, %v549
        %v556 = vsel %vm551, %v547, %v554
        %v557 = vsel %vm552, %v549, %v555
        %558 = vst [vmem:[%s333] sm:$0xff] %v556
        %559 = vst [vmem:[%s333 + $0x8] sm:$0xff] %v557
        %s560 = sand.u32 %s149, 1
        %s561 = scalar_lea.sflag [#allocation4], %s560
        %s562 = sand.u32 %s149, 1
        %s563 = smul.addr %s562, 16
        %s564 = scalar_lea.vmem [#allocation11], %s563
        // Predicated region
        $region61: #{tpu_custom_call.1} parent=39 // pred_check
          %p565 = pneg %p159
        $region62: #{tpu_custom_call.1} parent=39 // pred_check_branch
          %567 = sbr.rel (%p565) target = $region64
        $region63: #{tpu_custom_call.1} parent=39 // pred_region
          %569 = vsyncadd %s561, 0
          %s570 = smul.addr %s26, 2
          %s571 = smul.addr %s570, 8
          %s572 = scalar_lea.hbm %s5, %s571
          %s573 = sshll.u32 %s564, 4
          %s574 = int_to_ptr.vmem [resolvable:$true] %s573
          %s575 = sshll.u32 %s572, 4
          %s576 = int_to_ptr.hbm [resolvable:$true] %s575
          %581 = dma.vmem_to_hbm [thread:$0]  %s574, 256, %s576, %s561, 128, 128, 8
        $region64: #{tpu_custom_call.1} parent=39 // pred_fallthru
          _
      $region40: #{tpu_custom_call.1} parent=5 // pred_fallthru
        _
      %p582 = scmp.le.s32.totalorder 2, %s21
      // Predicated region
      $region65: #{tpu_custom_call.1} parent=5 // pred_check
        %p583 = pneg %p582
      $region66: #{tpu_custom_call.1} parent=5 // pred_check_branch
        %585 = sbr.rel (%p583) target = $region68
      $region67: #{tpu_custom_call.1} parent=5 // pred_region
        %s586 = ssub.s32 %s21, 2
        // Predicated region
        $region69: #{tpu_custom_call.1} parent=67 // pred_check
          %p587 = pneg %p165
        $region70: #{tpu_custom_call.1} parent=67 // pred_check_branch
          %589 = sbr.rel (%p587) target = $region72
        $region71: #{tpu_custom_call.1} parent=67 // pred_region
          %s590 = sand.u32 %s150, 1
          %s591 = scalar_lea.sflag [#allocation4], %s590
          %s592 = sand.u32 %s150, 1
          %s593 = smul.addr %s592, 16
          %s594 = scalar_lea.vmem [#allocation11], %s593
          %596 = dma.done %s591, 256
        $region72: #{tpu_custom_call.1} parent=67 // pred_fallthru
          _
      $region68: #{tpu_custom_call.1} parent=5 // pred_fallthru
        _
    $region6: #{tpu_custom_call.1} parent=1 // loop_footer
      %s25 = sadd.s32 1, %s21
    $region7: #{tpu_custom_call.1} parent=1 // loop_footer_branch
      %20 = sbr.rel target = $region3
    $region8: #{tpu_custom_call.1} parent=1 // loop_exit
      _
    %597 = vsyncpa [#allocation3], 1
    %s598 = scalar_lea.sflag [#allocation3], 1
    %599 = vsyncpa %s598, 1
    %600 = vsyncpa [#allocation6], 1
    %s601 = scalar_lea.sflag [#allocation6], 1
    %602 = vsyncpa %s601, 1
    %603 = vsyncpa [#allocation9], 1
    %604 = vsyncpa [#allocation4], 1
    %s605 = scalar_lea.sflag [#allocation4], 1
    %606 = vsyncpa %s605, 1

</llo_original>
